<compile_context>
chip_gen: v7x
topology: tpu7x:2x2x1
jax: 0.10.0
libtpu: 0.0.40
codegen_flags: <defaults>
</compile_context>

<pallas_src>
import functools

import jax
import jax.numpy as jnp
import numpy as np
from jax.experimental import pallas as pl


def _round_up(x, m):
    return ((x + m - 1) // m) * m


# ------------------------------ Pallas kernel -------------------------------

def _fused_embedding_kernel(x_ref, w_ref, m_ref, g_ref, b_ref, o_ref, *,
                            n_pad, d_model, seq_out, apply_ln, use_cls,
                            cls_position, ln_eps):
    """Whole EmbeddingLayer forward in one kernel invocation.

    x_ref : (Bp, Kp)        [1.0 cls col | one-hot cats | num | emb | 0-pad]
    w_ref : (Kp, Np)        block-diag [cls | tables | weights]   (no LN)
            (Kp, 2*Np)      [W | W @ M]                            (with LN)
    m_ref : (Np, Np)        block_diag(ones(D,D)/D) -> LN group averaging
    g_ref : (1, Np)         LayerNorm gamma tiled per sequence slot
    b_ref : (1, Np)         LayerNorm beta tiled per sequence slot
    o_ref : (Bp, Np)        lane-dense (multiple-of-128) output slab
    """
    # One MXU matmul performs every per-feature Linear projection, every
    # categorical embedding lookup, the cls-token placement and (when LN is
    # enabled) the per-32-lane-group means.
    ym = jnp.dot(x_ref[...], w_ref[...], preferred_element_type=jnp.float32)

    if not apply_ln:
        o_ref[...] = ym.astype(o_ref.dtype)
        return

    # Split at lane n_pad (multiple of 128) -> pure vreg selection, no XLU.
    y = ym[:, :n_pad]
    mean = ym[:, n_pad:]
    c = y - mean
    # Group variance broadcast over its own 32 lanes via one more MXU matmul
    # against the block-diagonal averaging matrix (no cross-lane XLU reduce,
    # no in-kernel reshape).
    var = jnp.dot(c * c, m_ref[...], preferred_element_type=jnp.float32)
    yn = c * jax.lax.rsqrt(var + ln_eps) * g_ref[...] + b_ref[...]

    if use_cls:
        # cls position is concatenated AFTER the norm in the torch module, so
        # its lanes keep the raw matmul output (the cls token itself).
        lane = jax.lax.broadcasted_iota(jnp.int32, y.shape, 1)
        if cls_position == 0:
            is_cls = lane < d_model
        else:
            is_cls = lane >= (seq_out - 1) * d_model
        out = jnp.where(is_cls, y, yn)
    else:
        out = yn

    o_ref[...] = out.astype(o_ref.dtype)


# ------------------------------ Module wrapper -------------------------------

class Config:
    d_model = 32
    embedding_type = "linear"
    embedding_bias = False
    layer_norm_after_embedding = True
    use_cls = True
    cls_position = 0
    embedding_dropout = 0.0
    embedding_projection = True
    embedding_activation = None  # Identity


class EmbeddingLayerPallas:
    def __init__(self, num_feature_info, cat_feature_info, emb_feature_info,
                 config, key):
        assert getattr(config, "embedding_type", "linear") == "linear"
        assert not getattr(config, "embedding_bias", False)
        self.d_model = int(getattr(config, "d_model", 128))
        self.layer_norm_after_embedding = bool(
            getattr(config, "layer_norm_after_embedding", False))
        self.use_cls = bool(getattr(config, "use_cls", False))
        self.cls_position = int(getattr(config, "cls_position", 0))

        D = self.d_model
        self.num_dims = [v["dimension"] for v in num_feature_info.values()]
        self.emb_dims = [v["dimension"] for v in emb_feature_info.values()]
        self.cat_sizes = [v["categories"] + 1 for v in cat_feature_info.values()]
        self.n_num = len(self.num_dims)
        self.n_emb = len(self.emb_dims)
        self.n_cat = len(self.cat_sizes)
        self.seq_feat = self.n_cat + self.n_num + self.n_emb
        self.seq_out = self.seq_feat + (1 if self.use_cls else 0)

        n_keys = self.n_num + self.n_emb + self.n_cat
        keys = jax.random.split(key, max(n_keys, 1))

        # nn.Linear(din, D, bias=False): W ~ U(-1/sqrt(din), 1/sqrt(din)); y = x @ W
        self.lin_weights = []
        for i, din in enumerate(self.num_dims + self.emb_dims):
            bound = 1.0 / float(np.sqrt(din))
            w = jax.random.uniform(keys[i], (din, D), jnp.float32, -bound, bound)
            self.lin_weights.append(w)

        # nn.Embedding(categories + 1, D): standard normal init
        self.cat_tables = []
        for j, rows in enumerate(self.cat_sizes):
            k = keys[self.n_num + self.n_emb + j]
            self.cat_tables.append(jax.random.normal(k, (rows, D), jnp.float32))

        # nn.LayerNorm(D) default params
        self.gamma = jnp.ones((D,), jnp.float32)
        self.beta = jnp.zeros((D,), jnp.float32)

        # cls token parameter (zeros, as in the torch module)
        self.cls_token = jnp.zeros((1, D), jnp.float32)

        # ---- Build the fused operands once (host-side) ---------------------
        # Feature (column) order matches the torch concat order [cat, num, emb],
        # with the cls slot at position 0 (or last) if enabled.
        self.n_out = self.seq_out * D                     # 224
        self.n_pad = _round_up(self.n_out, 128)           # 256 -> lane-dense
        blocks = ([np.asarray(t) for t in self.cat_tables] +
                  [np.asarray(w) for w in self.lin_weights])
        d_total = sum(b.shape[0] for b in blocks)
        self.k_raw = d_total + (1 if self.use_cls else 0)
        self.k_pad = _round_up(self.k_raw, 128)           # 128 -> aligned loads

        W = np.zeros((self.k_pad, self.n_pad), np.float64)
        col_base = 1 if (self.use_cls and self.cls_position == 0) else 0
        row = 1 if self.use_cls else 0
        for s, blk in enumerate(blocks):
            c0 = (col_base + s) * D
            W[row:row + blk.shape[0], c0:c0 + D] = blk
            row += blk.shape[0]
        if self.use_cls:
            cls_col = 0 if self.cls_position == 0 else self.seq_out - 1
            # fed by the constant 1.0 column of the input -> cls token lanes
            W[0, cls_col * D:(cls_col + 1) * D] = np.asarray(self.cls_token)[0]

        # Block-diagonal group-averaging matrix for the fused LayerNorm
        # (padded groups are harmless: they see all-zero lanes).
        n_groups = self.n_pad // D
        M = np.kron(np.eye(n_groups, dtype=np.float64),
                    np.full((D, D), 1.0 / D, dtype=np.float64))

        if self.layer_norm_after_embedding:
            # [W | W @ M]: one MXU matmul yields both the embeddings and their
            # per-group means (previous version needed a separate mean matmul).
            W_big = np.concatenate([W, W @ M], axis=1)
        else:
            W_big = W
        self.W = jnp.asarray(W_big.astype(np.float32))
        self.M = jnp.asarray(M.astype(np.float32))

        # LN params tiled per sequence slot (cls / pad block values are unused
        # or see zeros).
        self.gamma_t = jnp.tile(self.gamma, n_groups)[None, :]
        self.beta_t = jnp.tile(self.beta, n_groups)[None, :]

        self._kernel = functools.partial(
            _fused_embedding_kernel,
            n_pad=self.n_pad,
            d_model=D,
            seq_out=self.seq_out,
            apply_ln=self.layer_norm_after_embedding,
            use_cls=self.use_cls,
            cls_position=self.cls_position,
            ln_eps=1e-5,
        )

    def __call__(self, num_features, cat_features, emb_features):
        B = (cat_features[0].shape[0] if len(cat_features) > 0
             else num_features[0].shape[0])
        D = self.d_model
        b_pad = _round_up(max(B, 1), 8)

        # Host-side glue: a single concatenate along the lane axis.
        # Categorical lookups become one-hot blocks so the kernel's single
        # block-diagonal matmul performs the gather on the MXU.
        parts = []
        if self.use_cls:
            parts.append(jnp.ones((B, 1), jnp.float32))   # feeds the cls row
        parts += [jax.nn.one_hot(cat_features[j], self.cat_sizes[j],
                                 dtype=jnp.float32) for j in range(self.n_cat)]
        parts += [f.astype(jnp.float32) for f in num_features]
        parts += [f.astype(jnp.float32) for f in emb_features]
        if self.k_pad > self.k_raw:
            parts.append(jnp.zeros((B, self.k_pad - self.k_raw), jnp.float32))
        x_ext = jnp.concatenate(parts, axis=1)            # (B, Kp)
        if b_pad > B:
            x_ext = jnp.concatenate(
                [x_ext, jnp.zeros((b_pad - B, self.k_pad), jnp.float32)], axis=0)

        out_flat = pl.pallas_call(
            self._kernel,
            out_shape=jax.ShapeDtypeStruct((b_pad, self.n_pad), jnp.float32),
        )(x_ext, self.W, self.M, self.gamma_t, self.beta_t)

        # Layout plumbing only: drop lane/row padding, then a free row-major
        # reshape (B, S_out*D) -> (B, S_out, D).
        return out_flat[:B, :self.n_out].reshape(B, self.seq_out, D)

        # embedding_dropout(p=0.0) and embedding_activation=Identity are no-ops.


# ------------------------------ pure-JAX reference ---------------------------

def reference_forward(model, num_features, cat_features, emb_features):
    D = model.d_model
    cat_e = jnp.stack([model.cat_tables[j][cat_features[j]]
                       for j in range(model.n_cat)], axis=1)
    num_e = jnp.stack([num_features[i] @ model.lin_weights[i]
                       for i in range(model.n_num)], axis=1)
    emb_e = jnp.stack([emb_features[i] @ model.lin_weights[model.n_num + i]
                       for i in range(model.n_emb)], axis=1)

    def ln(z):
        m = jnp.mean(z, -1, keepdims=True)
        v = jnp.mean((z - m) ** 2, -1, keepdims=True)
        return (z - m) / jnp.sqrt(v + 1e-5) * model.gamma + model.beta

    if model.layer_norm_after_embedding:
        cat_e, num_e, emb_e = ln(cat_e), ln(num_e), ln(emb_e)
    x = jnp.concatenate([cat_e, num_e, emb_e], axis=1)
    if model.use_cls:
        B = x.shape[0]
        cls = jnp.broadcast_to(model.cls_token[None], (B, 1, D))
        x = (jnp.concatenate([cls, x], axis=1) if model.cls_position == 0
             else jnp.concatenate([x, cls], axis=1))
    return x


# ---------------------------------- main -------------------------------------

if __name__ == "__main__":
    key = jax.random.PRNGKey(0)
    B = 8

    num_feature_info = {
        "num0": {"dimension": 1},
        "num1": {"dimension": 4},
        "num2": {"dimension": 8},
    }
    cat_feature_info = {
        "cat0": {"categories": 5, "dimension": 1},
        "cat1": {"categories": 7, "dimension": 1},
    }
    emb_feature_info = {
        "emb0": {"dimension": 16},
    }

    k_param, k_data = jax.random.split(key)
    model = EmbeddingLayerPallas(num_feature_info, cat_feature_info,
                                 emb_feature_info, Config(), k_param)

    dkeys = jax.random.split(k_data, 8)
    num_features = [
        jax.random.normal(dkeys[i], (B, info["dimension"]), jnp.float32)
        for i, info in enumerate(num_feature_info.values())
    ]
    cat_features = [
        jax.random.randint(dkeys[3 + j], (B,), 0, info["categories"] + 1,
                           dtype=jnp.int32)
        for j, info in enumerate(cat_feature_info.values())
    ]
    emb_features = [
        jax.random.normal(dkeys[5 + i], (B, info["dimension"]), jnp.float32)
        for i, info in enumerate(emb_feature_info.values())
    ]

    out = jax.block_until_ready(
        model(num_features, cat_features, emb_features))

    ref = reference_forward(model, num_features, cat_features, emb_features)
    np.testing.assert_allclose(np.asarray(out), np.asarray(ref),
                               rtol=2e-5, atol=2e-5)

    # shape: (B, 1 + n_cat + n_num + n_emb, d_model) = (8, 7, 32)
    assert out.shape == (B, 1 + 2 + 3 + 1, model.d_model)
    print("KERNEL_OK")
</pallas_src>

<mosaic_0001>
module attributes {stable_mosaic.version = 11 : i64} {
  func.func @_fused_embedding_kernel(%arg0: memref<8x128xf32, #tpu.memory_space<vmem>>, %arg1: memref<128x512xf32, #tpu.memory_space<vmem>>, %arg2: memref<256x256xf32, #tpu.memory_space<vmem>>, %arg3: memref<1x256xf32, #tpu.memory_space<vmem>>, %arg4: memref<1x256xf32, #tpu.memory_space<vmem>>, %arg5: memref<8x256xf32, #tpu.memory_space<vmem>>) attributes {dimension_semantics = [], scalar_prefetch = 0 : i64, scratch_operands = 0 : i64, tpu.core_type = #tpu.core_type<tc>} {
    %c0 = arith.constant 0 : index
    %c0_0 = arith.constant 0 : index
    %0 = vector.load %arg0[%c0, %c0_0] : memref<8x128xf32, #tpu.memory_space<vmem>>, vector<8x128xf32>
    %c0_1 = arith.constant 0 : index
    %c0_2 = arith.constant 0 : index
    %1 = vector.load %arg1[%c0_1, %c0_2] : memref<128x512xf32, #tpu.memory_space<vmem>>, vector<128x512xf32>
    %cst = arith.constant dense<0.000000e+00> : vector<8x512xf32>
    %2 = tpu.matmul %0, %1, %cst {dimension_numbers = #tpu.dot_dimension_numbers<[1], [0], [0], [1], [0, 0, 1, 1], [], []>} : vector<8x128xf32>, vector<128x512xf32>, vector<8x512xf32> -> vector<8x512xf32>
    %3 = vector.extract_strided_slice %2 {offsets = [0, 0], sizes = [8, 256], strides = [1, 1]} : vector<8x512xf32> to vector<8x256xf32>
    %4 = vector.extract_strided_slice %2 {offsets = [0, 256], sizes = [8, 256], strides = [1, 1]} : vector<8x512xf32> to vector<8x256xf32>
    %5 = arith.subf %3, %4 : vector<8x256xf32>
    %6 = arith.mulf %5, %5 : vector<8x256xf32>
    %c0_3 = arith.constant 0 : index
    %c0_4 = arith.constant 0 : index
    %7 = vector.load %arg2[%c0_3, %c0_4] : memref<256x256xf32, #tpu.memory_space<vmem>>, vector<256x256xf32>
    %cst_5 = arith.constant dense<0.000000e+00> : vector<8x256xf32>
    %8 = tpu.matmul %6, %7, %cst_5 {dimension_numbers = #tpu.dot_dimension_numbers<[1], [0], [0], [1], [0, 0, 1, 1], [], []>} : vector<8x256xf32>, vector<256x256xf32>, vector<8x256xf32> -> vector<8x256xf32>
    %cst_6 = arith.constant 9.99999974E-6 : f32
    %9 = vector.broadcast %cst_6 : f32 to vector<8x256xf32>
    %10 = arith.addf %8, %9 : vector<8x256xf32>
    %11 = math.rsqrt %10 : vector<8x256xf32>
    %12 = arith.mulf %5, %11 : vector<8x256xf32>
    %c0_7 = arith.constant 0 : index
    %c0_8 = arith.constant 0 : index
    %13 = vector.load %arg3[%c0_7, %c0_8] : memref<1x256xf32, #tpu.memory_space<vmem>>, vector<1x256xf32>
    %14 = vector.broadcast %13 : vector<1x256xf32> to vector<8x256xf32>
    %15 = arith.mulf %12, %14 : vector<8x256xf32>
    %c0_9 = arith.constant 0 : index
    %c0_10 = arith.constant 0 : index
    %16 = vector.load %arg4[%c0_9, %c0_10] : memref<1x256xf32, #tpu.memory_space<vmem>>, vector<1x256xf32>
    %17 = vector.broadcast %16 : vector<1x256xf32> to vector<8x256xf32>
    %18 = arith.addf %15, %17 : vector<8x256xf32>
    %19 = tpu.iota {dimensions = array<i32: 1>} : vector<8x256xi32>
    %c32_i32 = arith.constant 32 : i32
    %20 = vector.broadcast %c32_i32 : i32 to vector<8x256xi32>
    %21 = arith.cmpi slt, %19, %20 : vector<8x256xi32>
    %22 = arith.select %21, %3, %18 : vector<8x256xi1>, vector<8x256xf32>
    %c0_11 = arith.constant 0 : index
    %c0_12 = arith.constant 0 : index
    %23 = vector.load %arg5[%c0_11, %c0_12] : memref<8x256xf32, #tpu.memory_space<vmem>>, vector<8x256xf32>
    tpu.vector_store %arg5[%c0_11, %c0_12], %22 {strides = array<i32>} : memref<8x256xf32, #tpu.memory_space<vmem>>, vector<8x256xf32>,
    return
  }
}

</mosaic_0001>

<llo_original>
// kernel: tpu_custom_call.1
$region0: #{tpu_custom_call.1}
  #allocation0 [shape = 'u32[]', space=smem, size = 0x4, offset = 0x4, fixed_abs, tag = 'smem constant byte address 0x4 - core index']
  #allocation1 [shape = 'u32[144,128]{1,0:T(1,128)}', space=vmem, size = 0x12000, scoped, tag = 'internal scratch']
  %s0 = inlined_call_operand.hbm [shape: f32[8,128], index: 0, kind: input, shape index: {}]
  %s1 = inlined_call_operand.hbm [shape: f32[128,512], index: 1, kind: input, shape index: {}]
  %s2 = inlined_call_operand.hbm [shape: f32[256,256], index: 2, kind: input, shape index: {}]
  %s3 = inlined_call_operand.vmem [shape: f32[1,256], index: 3, kind: input, shape index: {}]
  %s4 = inlined_call_operand.vmem [shape: f32[1,256], index: 4, kind: input, shape index: {}]
  %s5 = inlined_call_operand.hbm [shape: f32[8,256], index: 5, kind: output, shape index: {}]
  %s6 = sld [smem:[#allocation0]]
  $region42: #{tpu_custom_call.1} parent=0
    _
  %s8 = ssub.s32 1, %s6
  %s9 = scalar_select 0, %s8, %s6
  $region1: #{tpu_custom_call.1} parent=0
    #allocation2 [shape = 'u8[4096]{0}', space=vmem, size = 0x1000, scoped, tag = 'input window, operand 0, single buffered']
    #allocation3 [shape = 's32[1]{0}', space=sflag, size = 0x4, scoped, tag = 'scoped memory for tpu_custom_call.1']
    #allocation4 [shape = 's32[1]{0}', space=sflag, size = 0x4, scoped, tag = 'scoped memory for tpu_custom_call.1']
    #allocation5 [shape = 'u8[262144]{0}', space=vmem, size = 0x40000, scoped, tag = 'input window, operand 1, single buffered']
    #allocation6 [shape = 's32[1]{0}', space=sflag, size = 0x4, scoped, tag = 'scoped memory for tpu_custom_call.1']
    #allocation7 [shape = 'u8[262144]{0}', space=vmem, size = 0x40000, scoped, tag = 'input window, operand 2, single buffered']
    #allocation8 [shape = 'u8[8192]{0}', space=vmem, size = 0x2000, scoped, tag = 'output window, operand 0, single buffered']
    %10 = vsyncpa [#allocation3], 0
    %11 = vsyncpa [#allocation6], 0
    %12 = vsyncpa [#allocation4], 0
    // Predicated region
    $region2: #{tpu_custom_call.1} parent=1 // pred_check
      _
    $region3: #{tpu_custom_call.1} parent=1 // pred_check_branch
      %14 = sbr.rel (0) target = $region5
    $region4: #{tpu_custom_call.1} parent=1 // pred_region
      %s16 = ssub.s32 128, 128
      %17 = vsyncadd [#allocation3], %s16
      %s19 = sshll.u32 [#allocation2], 4
      %s20 = int_to_ptr.vmem [resolvable:$true] %s19
      %22 = dma.hbm_to_vmem [thread:$0]  %s0, 128, %s20, [#allocation3]
    $region5: #{tpu_custom_call.1} parent=1 // pred_fallthru
      _
    // Predicated region
    $region6: #{tpu_custom_call.1} parent=1 // pred_check
      _
    $region7: #{tpu_custom_call.1} parent=1 // pred_check_branch
      %24 = sbr.rel (0) target = $region9
    $region8: #{tpu_custom_call.1} parent=1 // pred_region
      %s26 = ssub.s32 8192, 8192
      %27 = vsyncadd [#allocation6], %s26
      %s28 = sshll.u32 [#allocation5], 4
      %s29 = int_to_ptr.vmem [resolvable:$true] %s28
      %34 = dma.hbm_to_vmem [thread:$0]  %s1, 8192, %s29, [#allocation6], 512, 512, 32
    $region9: #{tpu_custom_call.1} parent=1 // pred_fallthru
      _
    // Predicated region
    $region10: #{tpu_custom_call.1} parent=1 // pred_check
      _
    $region11: #{tpu_custom_call.1} parent=1 // pred_check_branch
      %36 = sbr.rel (0) target = $region13
    $region12: #{tpu_custom_call.1} parent=1 // pred_region
      %s38 = ssub.s32 8192, 8192
      %39 = vsyncadd [#allocation6], %s38
      %s40 = sshll.u32 [#allocation7], 4
      %s41 = int_to_ptr.vmem [resolvable:$true] %s40
      %46 = dma.hbm_to_vmem [thread:$0]  %s2, 8192, %s41, [#allocation6], 256, 256, 16
    $region13: #{tpu_custom_call.1} parent=1 // pred_fallthru
      _
    // Predicated region
    $region14: #{tpu_custom_call.1} parent=1 // pred_check
      _
    $region15: #{tpu_custom_call.1} parent=1 // pred_check_branch
      %48 = sbr.rel (0) target = $region17
    $region16: #{tpu_custom_call.1} parent=1 // pred_region
      _
    $region17: #{tpu_custom_call.1} parent=1 // pred_fallthru
      _
    // Predicated region
    $region18: #{tpu_custom_call.1} parent=1 // pred_check
      _
    $region19: #{tpu_custom_call.1} parent=1 // pred_check_branch
      %50 = sbr.rel (0) target = $region21
    $region20: #{tpu_custom_call.1} parent=1 // pred_region
      _
    $region21: #{tpu_custom_call.1} parent=1 // pred_fallthru
      _
    // Predicated region
    $region22: #{tpu_custom_call.1} parent=1 // pred_check
      _
    $region23: #{tpu_custom_call.1} parent=1 // pred_check_branch
      %52 = sbr.rel (0) target = $region25
    $region24: #{tpu_custom_call.1} parent=1 // pred_region
      %53 = dma.done [#allocation3], 128
    $region25: #{tpu_custom_call.1} parent=1 // pred_fallthru
      _
    // Predicated region
    $region26: #{tpu_custom_call.1} parent=1 // pred_check
      _
    $region27: #{tpu_custom_call.1} parent=1 // pred_check_branch
      %55 = sbr.rel (0) target = $region29
    $region28: #{tpu_custom_call.1} parent=1 // pred_region
      %56 = dma.done [#allocation6], 8192
    $region29: #{tpu_custom_call.1} parent=1 // pred_fallthru
      _
    // Predicated region
    $region30: #{tpu_custom_call.1} parent=1 // pred_check
      _
    $region31: #{tpu_custom_call.1} parent=1 // pred_check_branch
      %58 = sbr.rel (0) target = $region33
    $region32: #{tpu_custom_call.1} parent=1 // pred_region
      %59 = dma.done [#allocation6], 8192
    $region33: #{tpu_custom_call.1} parent=1 // pred_fallthru
      _
    %v60 = vld [vmem:[#allocation2] sm:$0xff]
    %v61 = vld [vmem:[#allocation5] sm:$0xff]
    %v62 = vld [vmem:[#allocation5 + $0x8] sm:$0xff]
    %v63 = vld [vmem:[#allocation5 + $0x10] sm:$0xff]
    %v64 = vld [vmem:[#allocation5 + $0x18] sm:$0xff]
    %v65 = vld [vmem:[#allocation5 + $0x20] sm:$0xff]
    %v66 = vld [vmem:[#allocation5 + $0x28] sm:$0xff]
    %v67 = vld [vmem:[#allocation5 + $0x30] sm:$0xff]
    %v68 = vld [vmem:[#allocation5 + $0x38] sm:$0xff]
    %v69 = vld [vmem:[#allocation5 + $0x40] sm:$0xff]
    %v70 = vld [vmem:[#allocation5 + $0x48] sm:$0xff]
    %v71 = vld [vmem:[#allocation5 + $0x50] sm:$0xff]
    %v72 = vld [vmem:[#allocation5 + $0x58] sm:$0xff]
    %v73 = vld [vmem:[#allocation5 + $0x60] sm:$0xff]
    %v74 = vld [vmem:[#allocation5 + $0x68] sm:$0xff]
    %v75 = vld [vmem:[#allocation5 + $0x70] sm:$0xff]
    %v76 = vld [vmem:[#allocation5 + $0x78] sm:$0xff]
    %v77 = vld [vmem:[#allocation5 + $0x80] sm:$0xff]
    %v78 = vld [vmem:[#allocation5 + $0x88] sm:$0xff]
    %v79 = vld [vmem:[#allocation5 + $0x90] sm:$0xff]
    %v80 = vld [vmem:[#allocation5 + $0x98] sm:$0xff]
    %v81 = vld [vmem:[#allocation5 + $0xa0] sm:$0xff]
    %v82 = vld [vmem:[#allocation5 + $0xa8] sm:$0xff]
    %v83 = vld [vmem:[#allocation5 + $0xb0] sm:$0xff]
    %v84 = vld [vmem:[#allocation5 + $0xb8] sm:$0xff]
    %v85 = vld [vmem:[#allocation5 + $0xc0] sm:$0xff]
    %v86 = vld [vmem:[#allocation5 + $0xc8] sm:$0xff]
    %v87 = vld [vmem:[#allocation5 + $0xd0] sm:$0xff]
    %v88 = vld [vmem:[#allocation5 + $0xd8] sm:$0xff]
    %v89 = vld [vmem:[#allocation5 + $0xe0] sm:$0xff]
    %v90 = vld [vmem:[#allocation5 + $0xe8] sm:$0xff]
    %v91 = vld [vmem:[#allocation5 + $0xf0] sm:$0xff]
    %v92 = vld [vmem:[#allocation5 + $0xf8] sm:$0xff]
    %v93 = vld [vmem:[#allocation5 + $0x100] sm:$0xff]
    %v94 = vld [vmem:[#allocation5 + $0x108] sm:$0xff]
    %v95 = vld [vmem:[#allocation5 + $0x110] sm:$0xff]
    %v96 = vld [vmem:[#allocation5 + $0x118] sm:$0xff]
    %v97 = vld [vmem:[#allocation5 + $0x120] sm:$0xff]
    %v98 = vld [vmem:[#allocation5 + $0x128] sm:$0xff]
    %v99 = vld [vmem:[#allocation5 + $0x130] sm:$0xff]
    %v100 = vld [vmem:[#allocation5 + $0x138] sm:$0xff]
    %v101 = vld [vmem:[#allocation5 + $0x140] sm:$0xff]
    %v102 = vld [vmem:[#allocation5 + $0x148] sm:$0xff]
    %v103 = vld [vmem:[#allocation5 + $0x150] sm:$0xff]
    %v104 = vld [vmem:[#allocation5 + $0x158] sm:$0xff]
    %v105 = vld [vmem:[#allocation5 + $0x160] sm:$0xff]
    %v106 = vld [vmem:[#allocation5 + $0x168] sm:$0xff]
    %v107 = vld [vmem:[#allocation5 + $0x170] sm:$0xff]
    %v108 = vld [vmem:[#allocation5 + $0x178] sm:$0xff]
    %v109 = vld [vmem:[#allocation5 + $0x180] sm:$0xff]
    %v110 = vld [vmem:[#allocation5 + $0x188] sm:$0xff]
    %v111 = vld [vmem:[#allocation5 + $0x190] sm:$0xff]
    %v112 = vld [vmem:[#allocation5 + $0x198] sm:$0xff]
    %v113 = vld [vmem:[#allocation5 + $0x1a0] sm:$0xff]
    %v114 = vld [vmem:[#allocation5 + $0x1a8] sm:$0xff]
    %v115 = vld [vmem:[#allocation5 + $0x1b0] sm:$0xff]
    %v116 = vld [vmem:[#allocation5 + $0x1b8] sm:$0xff]
    %v117 = vld [vmem:[#allocation5 + $0x1c0] sm:$0xff]
    %v118 = vld [vmem:[#allocation5 + $0x1c8] sm:$0xff]
    %v119 = vld [vmem:[#allocation5 + $0x1d0] sm:$0xff]
    %v120 = vld [vmem:[#allocation5 + $0x1d8] sm:$0xff]
    %v121 = vld [vmem:[#allocation5 + $0x1e0] sm:$0xff]
    %v122 = vld [vmem:[#allocation5 + $0x1e8] sm:$0xff]
    %v123 = vld [vmem:[#allocation5 + $0x1f0] sm:$0xff]
    %v124 = vld [vmem:[#allocation5 + $0x1f8] sm:$0xff]
    %125 = vmatprep.subr.mxu0 %v62
    %126 = vmatpush1.msra.mxu0 %v61
    %127 = vmatprep.subr.mxu0 %v66
    %128 = vmatpush1.msra.mxu0 %v65
    %129 = vmatprep.subr.mxu0 %v70
    %130 = vmatpush1.msra.mxu0 %v69
    %131 = vmatprep.subr.mxu0 %v74
    %132 = vmatpush1.msra.mxu0 %v73
    %133 = vmatprep.subr.mxu0 %v78
    %134 = vmatpush1.msra.mxu0 %v77
    %135 = vmatprep.subr.mxu0 %v82
    %136 = vmatpush1.msra.mxu0 %v81
    %137 = vmatprep.subr.mxu0 %v86
    %138 = vmatpush1.msra.mxu0 %v85
    %139 = vmatprep.subr.mxu0 %v90
    %140 = vmatpush1.msra.mxu0 %v89
    %141 = vmatprep.subr.mxu0 %v94
    %142 = vmatpush1.msra.mxu0 %v93
    %143 = vmatprep.subr.mxu0 %v98
    %144 = vmatpush1.msra.mxu0 %v97
    %145 = vmatprep.subr.mxu0 %v102
    %146 = vmatpush1.msra.mxu0 %v101
    %147 = vmatprep.subr.mxu0 %v106
    %148 = vmatpush1.msra.mxu0 %v105
    %149 = vmatprep.subr.mxu0 %v110
    %150 = vmatpush1.msra.mxu0 %v109
    %151 = vmatprep.subr.mxu0 %v114
    %152 = vmatpush1.msra.mxu0 %v113
    %153 = vmatprep.subr.mxu0 %v118
    %154 = vmatpush1.msra.mxu0 %v117
    %155 = vmatprep.subr.mxu0 %v122
    %156 = vmatpush1.msra.mxu0 %v121
    %157 = vmatprep.subr.mxu0 0.0
    %158 = vmatpush1.msra.mxu0 0.0
    %159 = vmatprep.subr.mxu0 0.0
    %160 = vmatpush1.msra.mxu0 0.0
    %161 = vmatprep.subr.mxu0 0.0
    %162 = vmatpush1.msra.mxu0 0.0
    %163 = vmatprep.subr.mxu0 0.0
    %164 = vmatpush1.msra.mxu0 0.0
    %165 = vmatprep.subr.mxu0 0.0
    %166 = vmatpush1.msra.mxu0 0.0
    %167 = vmatprep.subr.mxu0 0.0
    %168 = vmatpush1.msra.mxu0 0.0
    %169 = vmatprep.subr.mxu0 0.0
    %170 = vmatpush1.msra.mxu0 0.0
    %171 = vmatprep.subr.mxu0 0.0
    %172 = vmatpush1.msra.mxu0 0.0
    %173 = vmatprep.subr.mxu0 0.0
    %174 = vmatpush1.msra.mxu0 0.0
    %175 = vmatprep.subr.mxu0 0.0
    %176 = vmatpush1.msra.mxu0 0.0
    %177 = vmatprep.subr.mxu0 0.0
    %178 = vmatpush1.msra.mxu0 0.0
    %179 = vmatprep.subr.mxu0 0.0
    %180 = vmatpush1.msra.mxu0 0.0
    %181 = vmatprep.subr.mxu0 0.0
    %182 = vmatpush1.msra.mxu0 0.0
    %183 = vmatprep.subr.mxu0 0.0
    %184 = vmatpush1.msra.mxu0 0.0
    %185 = vmatprep.subr.mxu0 0.0
    %186 = vmatpush1.msra.mxu0 0.0
    %187 = vmatprep.subr.mxu0 0.0
    %188 = vmatpush1.msra.mxu0 0.0
    %189 = vmatprep.mubr.f32.mxu0 0.0
    %190 = vmatmul.mubr.f32.gmra.mrb[0].mxu0 %v60
    %v191 = vpop.f32.mrb[0].mxu0
    %v192 = vadd.f32 0.0, %v191
    %v193 = vpop.f32.mrb[0].mxu0
    %v194 = vadd.f32 0.0, %v193
    %195 = vdwg.mxu0
    %196 = vmatprep.subr.mxu0 %v64
    %197 = vmatpush1.msra.mxu0 %v63
    %198 = vmatprep.subr.mxu0 %v68
    %199 = vmatpush1.msra.mxu0 %v67
    %200 = vmatprep.subr.mxu0 %v72
    %201 = vmatpush1.msra.mxu0 %v71
    %202 = vmatprep.subr.mxu0 %v76
    %203 = vmatpush1.msra.mxu0 %v75
    %204 = vmatprep.subr.mxu0 %v80
    %205 = vmatpush1.msra.mxu0 %v79
    %206 = vmatprep.subr.mxu0 %v84
    %207 = vmatpush1.msra.mxu0 %v83
    %208 = vmatprep.subr.mxu0 %v88
    %209 = vmatpush1.msra.mxu0 %v87
    %210 = vmatprep.subr.mxu0 %v92
    %211 = vmatpush1.msra.mxu0 %v91
    %212 = vmatprep.subr.mxu0 %v96
    %213 = vmatpush1.msra.mxu0 %v95
    %214 = vmatprep.subr.mxu0 %v100
    %215 = vmatpush1.msra.mxu0 %v99
    %216 = vmatprep.subr.mxu0 %v104
    %217 = vmatpush1.msra.mxu0 %v103
    %218 = vmatprep.subr.mxu0 %v108
    %219 = vmatpush1.msra.mxu0 %v107
    %220 = vmatprep.subr.mxu0 %v112
    %221 = vmatpush1.msra.mxu0 %v111
    %222 = vmatprep.subr.mxu0 %v116
    %223 = vmatpush1.msra.mxu0 %v115
    %224 = vmatprep.subr.mxu0 %v120
    %225 = vmatpush1.msra.mxu0 %v119
    %226 = vmatprep.subr.mxu0 %v124
    %227 = vmatpush1.msra.mxu0 %v123
    %228 = vmatprep.subr.mxu0 0.0
    %229 = vmatpush1.msra.mxu0 0.0
    %230 = vmatprep.subr.mxu0 0.0
    %231 = vmatpush1.msra.mxu0 0.0
    %232 = vmatprep.subr.mxu0 0.0
    %233 = vmatpush1.msra.mxu0 0.0
    %234 = vmatprep.subr.mxu0 0.0
    %235 = vmatpush1.msra.mxu0 0.0
    %236 = vmatprep.subr.mxu0 0.0
    %237 = vmatpush1.msra.mxu0 0.0
    %238 = vmatprep.subr.mxu0 0.0
    %239 = vmatpush1.msra.mxu0 0.0
    %240 = vmatprep.subr.mxu0 0.0
    %241 = vmatpush1.msra.mxu0 0.0
    %242 = vmatprep.subr.mxu0 0.0
    %243 = vmatpush1.msra.mxu0 0.0
    %244 = vmatprep.subr.mxu0 0.0
    %245 = vmatpush1.msra.mxu0 0.0
    %246 = vmatprep.subr.mxu0 0.0
    %247 = vmatpush1.msra.mxu0 0.0
    %248 = vmatprep.subr.mxu0 0.0
    %249 = vmatpush1.msra.mxu0 0.0
    %250 = vmatprep.subr.mxu0 0.0
    %251 = vmatpush1.msra.mxu0 0.0
    %252 = vmatprep.subr.mxu0 0.0
    %253 = vmatpush1.msra.mxu0 0.0
    %254 = vmatprep.subr.mxu0 0.0
    %255 = vmatpush1.msra.mxu0 0.0
    %256 = vmatprep.subr.mxu0 0.0
    %257 = vmatpush1.msra.mxu0 0.0
    %258 = vmatprep.subr.mxu0 0.0
    %259 = vmatpush1.msra.mxu0 0.0
    %260 = vmatprep.mubr.f32.mxu0 0.0
    %261 = vmatmul.mubr.f32.gmra.mrb[0].mxu0 %v60
    %v262 = vpop.f32.mrb[0].mxu0
    %v263 = vadd.f32 0.0, %v262
    %v264 = vpop.f32.mrb[0].mxu0
    %v265 = vadd.f32 0.0, %v264
    %266 = vdwg.mxu0
    %v267 = vsub.f32 %v192, %v263
    %v268 = vsub.f32 %v194, %v265
    %v269 = vmul.f32 %v267, %v267
    %v270 = vmul.f32 %v268, %v268
    %v271 = vld [vmem:[#allocation7] sm:$0xff]
    %v272 = vld [vmem:[#allocation7 + $0x8] sm:$0xff]
    %v273 = vld [vmem:[#allocation7 + $0x10] sm:$0xff]
    %v274 = vld [vmem:[#allocation7 + $0x18] sm:$0xff]
    %v275 = vld [vmem:[#allocation7 + $0x20] sm:$0xff]
    %v276 = vld [vmem:[#allocation7 + $0x28] sm:$0xff]
    %v277 = vld [vmem:[#allocation7 + $0x30] sm:$0xff]
    %v278 = vld [vmem:[#allocation7 + $0x38] sm:$0xff]
    %v279 = vld [vmem:[#allocation7 + $0x40] sm:$0xff]
    %v280 = vld [vmem:[#allocation7 + $0x48] sm:$0xff]
    %v281 = vld [vmem:[#allocation7 + $0x50] sm:$0xff]
    %v282 = vld [vmem:[#allocation7 + $0x58] sm:$0xff]
    %v283 = vld [vmem:[#allocation7 + $0x60] sm:$0xff]
    %v284 = vld [vmem:[#allocation7 + $0x68] sm:$0xff]
    %v285 = vld [vmem:[#allocation7 + $0x70] sm:$0xff]
    %v286 = vld [vmem:[#allocation7 + $0x78] sm:$0xff]
    %v287 = vld [vmem:[#allocation7 + $0x80] sm:$0xff]
    %v288 = vld [vmem:[#allocation7 + $0x88] sm:$0xff]
    %v289 = vld [vmem:[#allocation7 + $0x90] sm:$0xff]
    %v290 = vld [vmem:[#allocation7 + $0x98] sm:$0xff]
    %v291 = vld [vmem:[#allocation7 + $0xa0] sm:$0xff]
    %v292 = vld [vmem:[#allocation7 + $0xa8] sm:$0xff]
    %v293 = vld [vmem:[#allocation7 + $0xb0] sm:$0xff]
    %v294 = vld [vmem:[#allocation7 + $0xb8] sm:$0xff]
    %v295 = vld [vmem:[#allocation7 + $0xc0] sm:$0xff]
    %v296 = vld [vmem:[#allocation7 + $0xc8] sm:$0xff]
    %v297 = vld [vmem:[#allocation7 + $0xd0] sm:$0xff]
    %v298 = vld [vmem:[#allocation7 + $0xd8] sm:$0xff]
    %v299 = vld [vmem:[#allocation7 + $0xe0] sm:$0xff]
    %v300 = vld [vmem:[#allocation7 + $0xe8] sm:$0xff]
    %v301 = vld [vmem:[#allocation7 + $0xf0] sm:$0xff]
    %v302 = vld [vmem:[#allocation7 + $0xf8] sm:$0xff]
    %v303 = vld [vmem:[#allocation7 + $0x100] sm:$0xff]
    %v304 = vld [vmem:[#allocation7 + $0x108] sm:$0xff]
    %v305 = vld [vmem:[#allocation7 + $0x110] sm:$0xff]
    %v306 = vld [vmem:[#allocation7 + $0x118] sm:$0xff]
    %v307 = vld [vmem:[#allocation7 + $0x120] sm:$0xff]
    %v308 = vld [vmem:[#allocation7 + $0x128] sm:$0xff]
    %v309 = vld [vmem:[#allocation7 + $0x130] sm:$0xff]
    %v310 = vld [vmem:[#allocation7 + $0x138] sm:$0xff]
    %v311 = vld [vmem:[#allocation7 + $0x140] sm:$0xff]
    %v312 = vld [vmem:[#allocation7 + $0x148] sm:$0xff]
    %v313 = vld [vmem:[#allocation7 + $0x150] sm:$0xff]
    %v314 = vld [vmem:[#allocation7 + $0x158] sm:$0xff]
    %v315 = vld [vmem:[#allocation7 + $0x160] sm:$0xff]
    %v316 = vld [vmem:[#allocation7 + $0x168] sm:$0xff]
    %v317 = vld [vmem:[#allocation7 + $0x170] sm:$0xff]
    %v318 = vld [vmem:[#allocation7 + $0x178] sm:$0xff]
    %v319 = vld [vmem:[#allocation7 + $0x180] sm:$0xff]
    %v320 = vld [vmem:[#allocation7 + $0x188] sm:$0xff]
    %v321 = vld [vmem:[#allocation7 + $0x190] sm:$0xff]
    %v322 = vld [vmem:[#allocation7 + $0x198] sm:$0xff]
    %v323 = vld [vmem:[#allocation7 + $0x1a0] sm:$0xff]
    %v324 = vld [vmem:[#allocation7 + $0x1a8] sm:$0xff]
    %v325 = vld [vmem:[#allocation7 + $0x1b0] sm:$0xff]
    %v326 = vld [vmem:[#allocation7 + $0x1b8] sm:$0xff]
    %v327 = vld [vmem:[#allocation7 + $0x1c0] sm:$0xff]
    %v328 = vld [vmem:[#allocation7 + $0x1c8] sm:$0xff]
    %v329 = vld [vmem:[#allocation7 + $0x1d0] sm:$0xff]
    %v330 = vld [vmem:[#allocation7 + $0x1d8] sm:$0xff]
    %v331 = vld [vmem:[#allocation7 + $0x1e0] sm:$0xff]
    %v332 = vld [vmem:[#allocation7 + $0x1e8] sm:$0xff]
    %v333 = vld [vmem:[#allocation7 + $0x1f0] sm:$0xff]
    %v334 = vld [vmem:[#allocation7 + $0x1f8] sm:$0xff]
    %335 = vmatprep.subr.mxu0 %v272
    %336 = vmatpush1.msra.mxu0 %v271
    %337 = vmatprep.subr.mxu0 %v274
    %338 = vmatpush1.msra.mxu0 %v273
    %339 = vmatprep.subr.mxu0 %v276
    %340 = vmatpush1.msra.mxu0 %v275
    %341 = vmatprep.subr.mxu0 %v278
    %342 = vmatpush1.msra.mxu0 %v277
    %343 = vmatprep.subr.mxu0 %v280
    %344 = vmatpush1.msra.mxu0 %v279
    %345 = vmatprep.subr.mxu0 %v282
    %346 = vmatpush1.msra.mxu0 %v281
    %347 = vmatprep.subr.mxu0 %v284
    %348 = vmatpush1.msra.mxu0 %v283
    %349 = vmatprep.subr.mxu0 %v286
    %350 = vmatpush1.msra.mxu0 %v285
    %351 = vmatprep.subr.mxu0 %v288
    %352 = vmatpush1.msra.mxu0 %v287
    %353 = vmatprep.subr.mxu0 %v290
    %354 = vmatpush1.msra.mxu0 %v289
    %355 = vmatprep.subr.mxu0 %v292
    %356 = vmatpush1.msra.mxu0 %v291
    %357 = vmatprep.subr.mxu0 %v294
    %358 = vmatpush1.msra.mxu0 %v293
    %359 = vmatprep.subr.mxu0 %v296
    %360 = vmatpush1.msra.mxu0 %v295
    %361 = vmatprep.subr.mxu0 %v298
    %362 = vmatpush1.msra.mxu0 %v297
    %363 = vmatprep.subr.mxu0 %v300
    %364 = vmatpush1.msra.mxu0 %v299
    %365 = vmatprep.subr.mxu0 %v302
    %366 = vmatpush1.msra.mxu0 %v301
    %367 = vmatprep.subr.mxu0 %v304
    %368 = vmatpush1.msra.mxu0 %v303
    %369 = vmatprep.subr.mxu0 %v306
    %370 = vmatpush1.msra.mxu0 %v305
    %371 = vmatprep.subr.mxu0 %v308
    %372 = vmatpush1.msra.mxu0 %v307
    %373 = vmatprep.subr.mxu0 %v310
    %374 = vmatpush1.msra.mxu0 %v309
    %375 = vmatprep.subr.mxu0 %v312
    %376 = vmatpush1.msra.mxu0 %v311
    %377 = vmatprep.subr.mxu0 %v314
    %378 = vmatpush1.msra.mxu0 %v313
    %379 = vmatprep.subr.mxu0 %v316
    %380 = vmatpush1.msra.mxu0 %v315
    %381 = vmatprep.subr.mxu0 %v318
    %382 = vmatpush1.msra.mxu0 %v317
    %383 = vmatprep.subr.mxu0 %v320
    %384 = vmatpush1.msra.mxu0 %v319
    %385 = vmatprep.subr.mxu0 %v322
    %386 = vmatpush1.msra.mxu0 %v321
    %387 = vmatprep.subr.mxu0 %v324
    %388 = vmatpush1.msra.mxu0 %v323
    %389 = vmatprep.subr.mxu0 %v326
    %390 = vmatpush1.msra.mxu0 %v325
    %391 = vmatprep.subr.mxu0 %v328
    %392 = vmatpush1.msra.mxu0 %v327
    %393 = vmatprep.subr.mxu0 %v330
    %394 = vmatpush1.msra.mxu0 %v329
    %395 = vmatprep.subr.mxu0 %v332
    %396 = vmatpush1.msra.mxu0 %v331
    %397 = vmatprep.subr.mxu0 %v334
    %398 = vmatpush1.msra.mxu0 %v333
    %399 = vmatprep.mubr.f32.mxu0 %v270
    %400 = vmatmul.mubr.f32.gmra.mrb[0].mxu0 %v269
    %v401 = vpop.f32.mrb[0].mxu0
    %v402 = vadd.f32 1e-05, %v401
    %v403 = vpop.f32.mrb[0].mxu0
    %v404 = vadd.f32 1e-05, %v403
    %405 = vdwg.mxu0
    %v406 = vrsqrt.pop %v402
    %v407 = vrsqrt.pop %v404
    %v408 = vmul.f32 %v267, %v406
    %v409 = vmul.f32 %v268, %v407
    %v410 = vld [vmem:[%s3] sm:$0x3]
    %v412 = vlaneseq
    %v413 = vshrl.u32 %v412, 7
    %v414 = vsub.s32 0, %v413
    %v415 = vrot.slane %v410, %v414
    %v416 = vlaneseq
    %v417 = vshrl.u32 %v416, 7
    %v418 = vsub.s32 1, %v417
    %v419 = vrot.slane %v410, %v418
    %v422 = vmul.f32 %v408, %v415
    %v423 = vmul.f32 %v409, %v419
    %v424 = vld [vmem:[%s4] sm:$0x3]
    %v426 = vlaneseq
    %v427 = vshrl.u32 %v426, 7
    %v428 = vsub.s32 0, %v427
    %v429 = vrot.slane %v424, %v428
    %v430 = vlaneseq
    %v431 = vshrl.u32 %v430, 7
    %v432 = vsub.s32 1, %v431
    %v433 = vrot.slane %v424, %v432
    %v436 = vadd.f32 %v422, %v429
    %v437 = vadd.f32 %v423, %v433
    %v438 = vlaneseq
    %v439 = vand.u32 %v438, 127
    %v440 = vadd.s32 %v439, 128
    %vm441 = vcmp.lt.s32.totalorder %v439, 32
    %vm442 = vcmp.lt.s32.totalorder %v440, 32
    %v443 = vsel %vm441, %v192, %v436
    %v444 = vsel %vm442, %v194, %v437
    %445 = vst [vmem:[#allocation8] sm:$0xff] %v443
    %446 = vst [vmem:[#allocation8 + $0x8] sm:$0xff] %v444
    // Predicated region
    $region34: #{tpu_custom_call.1} parent=1 // pred_check
      _
    $region35: #{tpu_custom_call.1} parent=1 // pred_check_branch
      %448 = sbr.rel (0) target = $region37
    $region36: #{tpu_custom_call.1} parent=1 // pred_region
      %s450 = ssub.s32 256, 256
      %451 = vsyncadd [#allocation4], %s450
      %s453 = sshll.u32 [#allocation8], 4
      %s454 = int_to_ptr.vmem [resolvable:$true] %s453
      %456 = dma.vmem_to_hbm [thread:$0]  %s454, 256, %s5, [#allocation4]
    $region37: #{tpu_custom_call.1} parent=1 // pred_fallthru
      _
    // Predicated region
    $region38: #{tpu_custom_call.1} parent=1 // pred_check
      _
    $region39: #{tpu_custom_call.1} parent=1 // pred_check_branch
      %458 = sbr.rel (0) target = $region41
    $region40: #{tpu_custom_call.1} parent=1 // pred_region
      %459 = dma.done [#allocation4], 256
    $region41: #{tpu_custom_call.1} parent=1 // pred_fallthru
      _
    %460 = vsyncpa [#allocation3], 1
    %461 = vsyncpa [#allocation6], 1
    %462 = vsyncpa [#allocation4], 1

</llo_original>
